<compile_context>
chip_gen: v5e
topology: v5e:2x2
jax: 0.10.0
libtpu: 0.0.40
codegen_flags: <defaults>
</compile_context>

<pallas_src>
import functools

import jax
import jax.numpy as jnp
import numpy as np
from jax.experimental import pallas as pl
from jax.experimental.pallas import tpu as pltpu

EPS = 1e-5


def _round_up(a, b):
    return (a + b - 1) // b * b


def _vmem_capacity_bytes():
    try:
        info = pltpu.get_tpu_info()
        cap = getattr(info, "vmem_capacity_bytes", None)
        if cap:
            return int(cap)
    except Exception:
        pass
    return 64 * 1024 * 1024  # conservative default (v7x per-TC VMEM)


# ----------------------------- Pallas kernel --------------------------------

def _ffn_kernel(x_ref, w1_ref, b1_ref, w2_ref, b2_ref, g_ref, beta_ref,
                o_ref, xb_ref, *, eps, pre_lnorm, tk, single_k):
    k = pl.program_id(1)
    nk = pl.num_programs(1)

    @pl.when(k == 0)
    def _init():
        # Zero the (VMEM-resident) f32 output tile; it doubles as the
        # accumulator across the K axis.
        o_ref[...] = jnp.zeros_like(o_ref)
        # Hoisted bf16 cast of the first-matmul LHS (x, or LN(x) in pre-norm).
        x = x_ref[...].astype(jnp.float32)
        if pre_lnorm:
            mu = jnp.mean(x, axis=-1, keepdims=True)
            var = jnp.mean(jnp.square(x - mu), axis=-1, keepdims=True)
            x = (x - mu) * jax.lax.rsqrt(var + eps) * g_ref[...] + beta_ref[...]
        xb_ref[...] = x.astype(jnp.bfloat16)

    # First matmul block: (tm, d_model) @ (d_model, tk) + b1[tk], ReLU.
    xin = xb_ref[...]
    if single_k:
        b1v = b1_ref[...]
    else:
        koff = pl.multiple_of(k * tk, tk)
        b1v = b1_ref[:, pl.ds(koff, tk)]
    h = jnp.dot(xin, w1_ref[...], preferred_element_type=jnp.float32)
    h = jnp.maximum(h + b1v, 0.0)

    # Second matmul block accumulated (f32) directly into the output tile.
    o_ref[...] += jnp.dot(h.astype(jnp.bfloat16), w2_ref[...],
                          preferred_element_type=jnp.float32)

    @pl.when(k == nk - 1)
    def _finalize():
        x = x_ref[...].astype(jnp.float32)
        core = o_ref[...] + b2_ref[...]
        if pre_lnorm:
            o_ref[...] = (core + x).astype(o_ref.dtype)
        else:
            z = x + core
            mu = jnp.mean(z, axis=-1, keepdims=True)
            var = jnp.mean(jnp.square(z - mu), axis=-1, keepdims=True)
            o_ref[...] = ((z - mu) * jax.lax.rsqrt(var + eps) * g_ref[...]
                          + beta_ref[...]).astype(o_ref.dtype)


# ------------------------------ wrapper --------------------------------------

def positionwise_ff_pallas(x, params, *, pre_lnorm=False, eps=EPS,
                           tm=512, tk=1024, force_tk=None):
    """Fused PositionwiseFF forward. x: (..., d_model) float32."""
    orig_shape = x.shape
    d_model = orig_shape[-1]
    x2 = x.reshape(-1, d_model).astype(jnp.float32)
    M = x2.shape[0]

    # Weights as bf16 MXU operands (fp32 accumulation in-kernel); LN/bias fp32.
    w1 = params["w1"].astype(jnp.bfloat16)          # (d_model, d_inner)
    w2 = params["w2"].astype(jnp.bfloat16)          # (d_inner, d_model)
    b1 = params["b1"].astype(jnp.float32)
    b2 = params["b2"].astype(jnp.float32)
    g = params["ln_g"].astype(jnp.float32)
    beta = params["ln_b"].astype(jnp.float32)
    d_inner = w1.shape[1]

    # --- VMEM budget (generation aware: 128 MiB v5e/v6e, 64 MiB v7x) ---------
    vmem_cap = _vmem_capacity_bytes()
    vmem_limit = max(32 * 2**20, min(int(vmem_cap * 0.75), 112 * 2**20))
    budget = int(vmem_limit * 0.85)

    # --- M (row) tiling -------------------------------------------------------
    tm = max(8, (min(tm, _round_up(M, 8)) // 8) * 8)
    if M % tm:
        # Prefer a tm that divides M exactly (avoids HBM pad + slice round trip).
        for cand in range(tm, max(64, tm // 4) - 1, -8):
            if M % cand == 0:
                tm = cand
                break
    # Give the "parallel" M axis >= 2 programs when affordable (v7x megacore).
    if M <= tm and tm >= 256:
        half = ((tm // 2) + 7) // 8 * 8
        if (M % tm) or (M % half == 0):
            tm = half
    Mp = _round_up(M, tm)
    if Mp != M:
        x2 = jnp.pad(x2, ((0, Mp - M), (0, 0)))

    # --- K (d_inner) tiling / weight residency --------------------------------
    def _est(tk_blk, kp):
        return (2 * tm * d_model * 4        # x tile (double-buffered, f32)
                + 2 * tm * d_model * 4      # output tile (f32 accumulator)
                + 2 * d_model * tk_blk * 2  # W1 block (bf16, double-buffered)
                + 2 * tk_blk * d_model * 2  # W2 block (bf16, double-buffered)
                + 2 * kp * 4                # b1 (resident)
                + 8 * d_model * 4           # b2 / gamma / beta
                + tm * d_model * 2          # bf16 x cache scratch
                + tm * tk_blk * 6)          # hidden activation (f32 + bf16)

    if force_tk is not None:
        tk = min(int(force_tk), d_inner)
        if d_inner >= 128:
            tk = max(128, (tk // 128) * 128)
        Kp = _round_up(d_inner, tk)
    elif _est(d_inner, d_inner) <= budget:
        tk = Kp = d_inner            # weights fully VMEM-resident, single K block
    elif d_inner >= 128:
        tk = max(128, (min(tk, d_inner) // 128) * 128)
        while tk > 128 and _est(tk, _round_up(d_inner, tk)) > budget:
            tk -= 128
        Kp = _round_up(d_inner, tk)
    else:
        tk = Kp = d_inner

    if Kp != d_inner:                # relu(0) @ 0 contributes nothing — exact
        w1 = jnp.pad(w1, ((0, 0), (0, Kp - d_inner)))
        w2 = jnp.pad(w2, ((0, Kp - d_inner), (0, 0)))
        b1 = jnp.pad(b1, (0, Kp - d_inner))

    # 2-D (1, d) vectors so in-kernel broadcasts hoist once per tile.
    b1 = b1.reshape(1, Kp)
    b2 = b2.reshape(1, d_model)
    g = g.reshape(1, d_model)
    beta = beta.reshape(1, d_model)

    grid = (Mp // tm, Kp // tk)
    kern = functools.partial(_ffn_kernel, eps=eps, pre_lnorm=pre_lnorm,
                             tk=tk, single_k=(grid[1] == 1))

    out = pl.pallas_call(
        kern,
        grid=grid,
        in_specs=[
            pl.BlockSpec((tm, d_model), lambda i, k: (i, 0)),   # x (resident over k)
            pl.BlockSpec((d_model, tk), lambda i, k: (0, k)),   # W1 column block
            pl.BlockSpec((1, Kp), lambda i, k: (0, 0)),         # b1 (fully resident)
            pl.BlockSpec((tk, d_model), lambda i, k: (k, 0)),   # W2 row block
            pl.BlockSpec((1, d_model), lambda i, k: (0, 0)),    # b2
            pl.BlockSpec((1, d_model), lambda i, k: (0, 0)),    # gamma
            pl.BlockSpec((1, d_model), lambda i, k: (0, 0)),    # beta
        ],
        out_specs=pl.BlockSpec((tm, d_model), lambda i, k: (i, 0)),
        out_shape=jax.ShapeDtypeStruct((Mp, d_model), jnp.float32),
        scratch_shapes=[
            pltpu.VMEM((tm, d_model), jnp.bfloat16),   # bf16 x / LN(x) cache
        ],
        compiler_params=pltpu.CompilerParams(
            dimension_semantics=("parallel", "arbitrary"),
            vmem_limit_bytes=vmem_limit),
    )(x2, w1, b1, w2, b2, g, beta)

    if Mp != M:
        out = out[:M]
    return out.reshape(orig_shape)


# --------------------------- pure-JAX reference ------------------------------

def positionwise_ff_ref(x, params, *, pre_lnorm=False, eps=EPS):
    def ln(z):
        mu = z.mean(-1, keepdims=True)
        var = jnp.square(z - mu).mean(-1, keepdims=True)
        return (z - mu) / jnp.sqrt(var + eps) * params["ln_g"] + params["ln_b"]

    if pre_lnorm:
        h = jnp.maximum(ln(x) @ params["w1"] + params["b1"], 0.0)
        core = h @ params["w2"] + params["b2"]
        return core + x
    h = jnp.maximum(x @ params["w1"] + params["b1"], 0.0)
    core = h @ params["w2"] + params["b2"]
    return ln(x + core)


# ---------------------------------- main --------------------------------------

if __name__ == "__main__":
    seq_len, bsz, d_model, d_inner = 16, 8, 128, 256   # lane-dense (128-mult) dims

    key = jax.random.PRNGKey(0)
    k1, k2, k3, k4, k5, k6, kx = jax.random.split(key, 7)
    params = dict(
        w1=jax.random.normal(k1, (d_model, d_inner), jnp.float32) / np.sqrt(d_model),
        b1=0.1 * jax.random.normal(k2, (d_inner,), jnp.float32),
        w2=jax.random.normal(k3, (d_inner, d_model), jnp.float32) / np.sqrt(d_inner),
        b2=0.1 * jax.random.normal(k4, (d_model,), jnp.float32),
        ln_g=1.0 + 0.05 * jax.random.normal(k5, (d_model,), jnp.float32),
        ln_b=0.05 * jax.random.normal(k6, (d_model,), jnp.float32),
    )
    x = jax.random.normal(kx, (seq_len, bsz, d_model), jnp.float32)

    # Exercise both norm placements, both the weight-resident (force_tk=None)
    # and the K-tiled (force_tk=128) paths.
    for pre_lnorm in (False, True):
        for force_tk in (None, 128):
            out = positionwise_ff_pallas(x, params, pre_lnorm=pre_lnorm,
                                         force_tk=force_tk)
            out = jax.block_until_ready(out)
            assert out.shape == (seq_len, bsz, d_model)
            ref = positionwise_ff_ref(x, params, pre_lnorm=pre_lnorm)
            np.testing.assert_allclose(np.asarray(out), np.asarray(ref),
                                       rtol=2e-2, atol=2e-2)

    print("KERNEL_OK")
</pallas_src>

<mosaic_0001>
module attributes {stable_mosaic.version = 11 : i64} {
  func.func @_ffn_kernel(%arg0: i32, %arg1: i32, %arg2: memref<128x128xf32, #tpu.memory_space<vmem>>, %arg3: memref<128x256xbf16, #tpu.memory_space<vmem>>, %arg4: memref<1x256xf32, #tpu.memory_space<vmem>>, %arg5: memref<256x128xbf16, #tpu.memory_space<vmem>>, %arg6: memref<1x128xf32, #tpu.memory_space<vmem>>, %arg7: memref<1x128xf32, #tpu.memory_space<vmem>>, %arg8: memref<1x128xf32, #tpu.memory_space<vmem>>, %arg9: memref<128x128xf32, #tpu.memory_space<vmem>>, %arg10: memref<128x128xbf16, #tpu.memory_space<vmem>>) attributes {dimension_semantics = [#tpu.dimension_semantics<parallel>, #tpu.dimension_semantics<arbitrary>], iteration_bounds = array<i64: 1, 1>, scalar_prefetch = 0 : i64, scratch_operands = 1 : i64, tpu.core_type = #tpu.core_type<tc>, window_params = [{transform_indices = @transform_0, window_bounds = array<i64: 128, 128>}, {transform_indices = @transform_1, window_bounds = array<i64: 128, 256>}, {pipeline_mode = #tpu.pipeline_mode<synchronous>, transform_indices = @transform_2, window_bounds = array<i64: 1, 256>}, {transform_indices = @transform_3, window_bounds = array<i64: 256, 128>}, {pipeline_mode = #tpu.pipeline_mode<synchronous>, transform_indices = @transform_4, window_bounds = array<i64: 1, 128>}, {pipeline_mode = #tpu.pipeline_mode<synchronous>, transform_indices = @transform_5, window_bounds = array<i64: 1, 128>}, {pipeline_mode = #tpu.pipeline_mode<synchronous>, transform_indices = @transform_6, window_bounds = array<i64: 1, 128>}, {transform_indices = @transform_7, window_bounds = array<i64: 128, 128>}]} {
    %c0_i32 = arith.constant 0 : i32
    %0 = arith.cmpi eq, %arg1, %c0_i32 : i32
    %1 = arith.extui %0 : i1 to i32
    %c0_i32_0 = arith.constant 0 : i32
    %2 = arith.cmpi ne, %1, %c0_i32_0 : i32
    scf.if %2 {
      %cst_16 = arith.constant 0.000000e+00 : f32
      %20 = vector.broadcast %cst_16 : f32 to vector<128x128xf32>
      %c0_17 = arith.constant 0 : index
      %c0_18 = arith.constant 0 : index
      %21 = vector.load %arg9[%c0_17, %c0_18] : memref<128x128xf32, #tpu.memory_space<vmem>>, vector<128x128xf32>
      tpu.vector_store %arg9[%c0_17, %c0_18], %20 {strides = array<i32>} : memref<128x128xf32, #tpu.memory_space<vmem>>, vector<128x128xf32>,
      %c0_19 = arith.constant 0 : index
      %c0_20 = arith.constant 0 : index
      %22 = vector.load %arg2[%c0_19, %c0_20] : memref<128x128xf32, #tpu.memory_space<vmem>>, vector<128x128xf32>
      %23 = arith.truncf %22 : vector<128x128xf32> to vector<128x128xbf16>
      %c0_21 = arith.constant 0 : index
      %c0_22 = arith.constant 0 : index
      %24 = vector.load %arg10[%c0_21, %c0_22] : memref<128x128xbf16, #tpu.memory_space<vmem>>, vector<128x128xbf16>
      tpu.vector_store %arg10[%c0_21, %c0_22], %23 {strides = array<i32>} : memref<128x128xbf16, #tpu.memory_space<vmem>>, vector<128x128xbf16>,
    } else {
    }
    %c0 = arith.constant 0 : index
    %c0_1 = arith.constant 0 : index
    %3 = vector.load %arg10[%c0, %c0_1] : memref<128x128xbf16, #tpu.memory_space<vmem>>, vector<128x128xbf16>
    %c0_2 = arith.constant 0 : index
    %c0_3 = arith.constant 0 : index
    %4 = vector.load %arg4[%c0_2, %c0_3] : memref<1x256xf32, #tpu.memory_space<vmem>>, vector<1x256xf32>
    %c0_4 = arith.constant 0 : index
    %c0_5 = arith.constant 0 : index
    %5 = vector.load %arg3[%c0_4, %c0_5] : memref<128x256xbf16, #tpu.memory_space<vmem>>, vector<128x256xbf16>
    %cst = arith.constant dense<0.000000e+00> : vector<128x256xf32>
    %6 = tpu.matmul %3, %5, %cst {dimension_numbers = #tpu.dot_dimension_numbers<[1], [0], [0], [1], [0, 0, 1, 1], [], []>} : vector<128x128xbf16>, vector<128x256xbf16>, vector<128x256xf32> -> vector<128x256xf32>
    %7 = vector.broadcast %4 : vector<1x256xf32> to vector<128x256xf32>
    %8 = arith.addf %6, %7 : vector<128x256xf32>
    %cst_6 = arith.constant 0.000000e+00 : f32
    %9 = vector.broadcast %cst_6 : f32 to vector<128x256xf32>
    %10 = arith.maximumf %8, %9 : vector<128x256xf32>
    %c0_7 = arith.constant 0 : index
    %c0_8 = arith.constant 0 : index
    %11 = vector.load %arg9[%c0_7, %c0_8] : memref<128x128xf32, #tpu.memory_space<vmem>>, vector<128x128xf32>
    %12 = arith.truncf %10 : vector<128x256xf32> to vector<128x256xbf16>
    %c0_9 = arith.constant 0 : index
    %c0_10 = arith.constant 0 : index
    %13 = vector.load %arg5[%c0_9, %c0_10] : memref<256x128xbf16, #tpu.memory_space<vmem>>, vector<256x128xbf16>
    %cst_11 = arith.constant dense<0.000000e+00> : vector<128x128xf32>
    %14 = tpu.matmul %12, %13, %cst_11 {dimension_numbers = #tpu.dot_dimension_numbers<[1], [0], [0], [1], [0, 0, 1, 1], [], []>} : vector<128x256xbf16>, vector<256x128xbf16>, vector<128x128xf32> -> vector<128x128xf32>
    %15 = arith.addf %11, %14 : vector<128x128xf32>
    %c0_12 = arith.constant 0 : index
    %c0_13 = arith.constant 0 : index
    %16 = vector.load %arg9[%c0_12, %c0_13] : memref<128x128xf32, #tpu.memory_space<vmem>>, vector<128x128xf32>
    tpu.vector_store %arg9[%c0_12, %c0_13], %15 {strides = array<i32>} : memref<128x128xf32, #tpu.memory_space<vmem>>, vector<128x128xf32>,
    %c0_i32_14 = arith.constant 0 : i32
    %17 = arith.cmpi eq, %arg1, %c0_i32_14 : i32
    %18 = arith.extui %17 : i1 to i32
    %c0_i32_15 = arith.constant 0 : i32
    %19 = arith.cmpi ne, %18, %c0_i32_15 : i32
    scf.if %19 {
      %c0_16 = arith.constant 0 : index
      %c0_17 = arith.constant 0 : index
      %20 = vector.load %arg2[%c0_16, %c0_17] : memref<128x128xf32, #tpu.memory_space<vmem>>, vector<128x128xf32>
      %c0_18 = arith.constant 0 : index
      %c0_19 = arith.constant 0 : index
      %21 = vector.load %arg9[%c0_18, %c0_19] : memref<128x128xf32, #tpu.memory_space<vmem>>, vector<128x128xf32>
      %c0_20 = arith.constant 0 : index
      %c0_21 = arith.constant 0 : index
      %22 = vector.load %arg6[%c0_20, %c0_21] : memref<1x128xf32, #tpu.memory_space<vmem>>, vector<1x128xf32>
      %23 = vector.broadcast %22 : vector<1x128xf32> to vector<128x128xf32>
      %24 = arith.addf %21, %23 : vector<128x128xf32>
      %25 = arith.addf %20, %24 : vector<128x128xf32>
      %cst_22 = arith.constant dense<0.000000e+00> : vector<128xf32>
      %26 = vector.multi_reduction <add>, %25, %cst_22 [1] : vector<128x128xf32> to vector<128xf32>
      %27 = vector.shape_cast %26 : vector<128xf32> to vector<128x1xf32>
      %cst_23 = arith.constant 1.280000e+02 : f32
      %28 = vector.broadcast %cst_23 : f32 to vector<128x1xf32>
      %29 = arith.divf %27, %28 : vector<128x1xf32>
      %30 = vector.broadcast %29 : vector<128x1xf32> to vector<128x128xf32>
      %31 = arith.subf %25, %30 : vector<128x128xf32>
      %32 = arith.mulf %31, %31 : vector<128x128xf32>
      %cst_24 = arith.constant dense<0.000000e+00> : vector<128xf32>
      %33 = vector.multi_reduction <add>, %32, %cst_24 [1] : vector<128x128xf32> to vector<128xf32>
      %34 = vector.shape_cast %33 : vector<128xf32> to vector<128x1xf32>
      %cst_25 = arith.constant 1.280000e+02 : f32
      %35 = vector.broadcast %cst_25 : f32 to vector<128x1xf32>
      %36 = arith.divf %34, %35 : vector<128x1xf32>
      %37 = vector.broadcast %29 : vector<128x1xf32> to vector<128x128xf32>
      %38 = arith.subf %25, %37 : vector<128x128xf32>
      %cst_26 = arith.constant 9.99999974E-6 : f32
      %39 = vector.broadcast %cst_26 : f32 to vector<128x1xf32>
      %40 = arith.addf %36, %39 : vector<128x1xf32>
      %41 = math.rsqrt %40 : vector<128x1xf32>
      %42 = vector.broadcast %41 : vector<128x1xf32> to vector<128x128xf32>
      %43 = arith.mulf %38, %42 : vector<128x128xf32>
      %c0_27 = arith.constant 0 : index
      %c0_28 = arith.constant 0 : index
      %44 = vector.load %arg7[%c0_27, %c0_28] : memref<1x128xf32, #tpu.memory_space<vmem>>, vector<1x128xf32>
      %45 = vector.broadcast %44 : vector<1x128xf32> to vector<128x128xf32>
      %46 = arith.mulf %43, %45 : vector<128x128xf32>
      %c0_29 = arith.constant 0 : index
      %c0_30 = arith.constant 0 : index
      %47 = vector.load %arg8[%c0_29, %c0_30] : memref<1x128xf32, #tpu.memory_space<vmem>>, vector<1x128xf32>
      %48 = vector.broadcast %47 : vector<1x128xf32> to vector<128x128xf32>
      %49 = arith.addf %46, %48 : vector<128x128xf32>
      %c0_31 = arith.constant 0 : index
      %c0_32 = arith.constant 0 : index
      %50 = vector.load %arg9[%c0_31, %c0_32] : memref<128x128xf32, #tpu.memory_space<vmem>>, vector<128x128xf32>
      tpu.vector_store %arg9[%c0_31, %c0_32], %49 {strides = array<i32>} : memref<128x128xf32, #tpu.memory_space<vmem>>, vector<128x128xf32>,
    } else {
    }
    return
  }
  func.func @transform_0(%arg0: i32, %arg1: i32) -> (i32, i32) {
    %c0_i32 = arith.constant 0 : i32
    %c0_i32_0 = arith.constant 0 : i32
    return %arg0, %c0_i32 : i32, i32
  }
  func.func @transform_1(%arg0: i32, %arg1: i32) -> (i32, i32) {
    %c0_i32 = arith.constant 0 : i32
    %c0_i32_0 = arith.constant 0 : i32
    return %c0_i32, %arg1 : i32, i32
  }
  func.func @transform_2(%arg0: i32, %arg1: i32) -> (i32, i32) {
    %c0_i32 = arith.constant 0 : i32
    %c0_i32_0 = arith.constant 0 : i32
    %c0_i32_1 = arith.constant 0 : i32
    return %c0_i32, %c0_i32_0 : i32, i32
  }
  func.func @transform_3(%arg0: i32, %arg1: i32) -> (i32, i32) {
    %c0_i32 = arith.constant 0 : i32
    %c0_i32_0 = arith.constant 0 : i32
    return %arg1, %c0_i32 : i32, i32
  }
  func.func @transform_4(%arg0: i32, %arg1: i32) -> (i32, i32) {
    %c0_i32 = arith.constant 0 : i32
    %c0_i32_0 = arith.constant 0 : i32
    %c0_i32_1 = arith.constant 0 : i32
    return %c0_i32, %c0_i32_0 : i32, i32
  }
  func.func @transform_5(%arg0: i32, %arg1: i32) -> (i32, i32) {
    %c0_i32 = arith.constant 0 : i32
    %c0_i32_0 = arith.constant 0 : i32
    %c0_i32_1 = arith.constant 0 : i32
    return %c0_i32, %c0_i32_0 : i32, i32
  }
  func.func @transform_6(%arg0: i32, %arg1: i32) -> (i32, i32) {
    %c0_i32 = arith.constant 0 : i32
    %c0_i32_0 = arith.constant 0 : i32
    %c0_i32_1 = arith.constant 0 : i32
    return %c0_i32, %c0_i32_0 : i32, i32
  }
  func.func @transform_7(%arg0: i32, %arg1: i32) -> (i32, i32) {
    %c0_i32 = arith.constant 0 : i32
    %c0_i32_0 = arith.constant 0 : i32
    return %arg0, %c0_i32 : i32, i32
  }
}

</mosaic_0001>

<llo_original>
// kernel: tpu_custom_call.1
$region0: #{tpu_custom_call.1}
  #allocation0 [shape = 'u32[]', space=smem, size = 0x4, offset = 0x4, fixed_abs, tag = 'smem constant byte address 0x4 - core index']
  #allocation1 [shape = 'u32[72,128]{1,0:T(1,128)}', space=vmem, size = 0x9000, scoped, tag = 'internal scratch']
  #allocation2 [shape = 'bf16[128,128]{1,0:T(8,128)(2,1)}', space=vmem, size = 0x8000, scoped, tag = 'scratch operand']
  %s0 = inlined_call_operand.hbm [shape: f32[128,128], index: 0, kind: input, shape index: {}]
  %s1 = inlined_call_operand.hbm [shape: bf16[128,256], index: 1, kind: input, shape index: {}]
  %s2 = inlined_call_operand.hbm [shape: f32[1,256], index: 2, kind: input, shape index: {}]
  %s3 = inlined_call_operand.hbm [shape: bf16[256,128], index: 3, kind: input, shape index: {}]
  %s4 = inlined_call_operand.vmem [shape: f32[1,128], index: 4, kind: input, shape index: {}]
  %s5 = inlined_call_operand.vmem [shape: f32[1,128], index: 5, kind: input, shape index: {}]
  %s6 = inlined_call_operand.vmem [shape: f32[1,128], index: 6, kind: input, shape index: {}]
  %s7 = inlined_call_operand.hbm [shape: f32[128,128], index: 7, kind: output, shape index: {}]
  %s8 = sld [smem:[#allocation0]]
  $region62: #{tpu_custom_call.1} parent=0
    _
  %s10 = ssub.s32 1, %s8
  %s11 = scalar_select 0, %s10, %s8
  $region1: #{tpu_custom_call.1} parent=0
    #allocation3 [shape = 'u8[65536]{0}', space=vmem, size = 0x10000, scoped, tag = 'input window, operand 0, single buffered']
    #allocation4 [shape = 's32[1]{0}', space=sflag, size = 0x4, scoped, tag = 'scoped memory for tpu_custom_call.1']
    #allocation5 [shape = 's32[1]{0}', space=sflag, size = 0x4, scoped, tag = 'scoped memory for tpu_custom_call.1']
    #allocation6 [shape = 'u8[65536]{0}', space=vmem, size = 0x10000, scoped, tag = 'input window, operand 1, single buffered']
    #allocation7 [shape = 's32[1]{0}', space=sflag, size = 0x4, scoped, tag = 'scoped memory for tpu_custom_call.1']
    #allocation8 [shape = 'u8[1024]{0}', space=vmem, size = 0x400, scoped, tag = 'input window, operand 2, single buffered']
    #allocation9 [shape = 'u8[65536]{0}', space=vmem, size = 0x10000, scoped, tag = 'input window, operand 3, single buffered']
    #allocation10 [shape = 's32[1]{0}', space=sflag, size = 0x4, scoped, tag = 'scoped memory for tpu_custom_call.1']
    #allocation11 [shape = 'u8[65536]{0}', space=vmem, size = 0x10000, scoped, tag = 'output window, operand 0, single buffered']
    %12 = vsyncpa [#allocation4], 0
    %13 = vsyncpa [#allocation7], 0
    %14 = vsyncpa [#allocation10], 0
    %15 = vsyncpa [#allocation5], 0
    // Predicated region
    $region2: #{tpu_custom_call.1} parent=1 // pred_check
      _
    $region3: #{tpu_custom_call.1} parent=1 // pred_check_branch
      %17 = sbr.rel (0) target = $region5
    $region4: #{tpu_custom_call.1} parent=1 // pred_region
      %19 = vsyncadd [#allocation4], 0
      %s20 = sshll.u32 %s0, 4
      %s21 = int_to_ptr.hbm [resolvable:$true] %s20
      %s22 = sshll.u32 [#allocation3], 4
      %s23 = int_to_ptr.vmem [resolvable:$true] %s22
      %28 = dma.hbm_to_vmem [thread:$0]  %s21, 2048, %s23, [#allocation4], 128, 128, 8
    $region5: #{tpu_custom_call.1} parent=1 // pred_fallthru
      _
    // Predicated region
    $region6: #{tpu_custom_call.1} parent=1 // pred_check
      _
    $region7: #{tpu_custom_call.1} parent=1 // pred_check_branch
      %30 = sbr.rel (0) target = $region9
    $region8: #{tpu_custom_call.1} parent=1 // pred_region
      %32 = vsyncadd [#allocation7], 0
      %s33 = sshll.u32 %s1, 4
      %s34 = int_to_ptr.hbm [resolvable:$true] %s33
      %s35 = sshll.u32 [#allocation6], 4
      %s36 = int_to_ptr.vmem [resolvable:$true] %s35
      %41 = dma.hbm_to_vmem [thread:$0]  %s34, 2048, %s36, [#allocation7], 128, 128, 8
    $region9: #{tpu_custom_call.1} parent=1 // pred_fallthru
      _
    // Predicated region
    $region10: #{tpu_custom_call.1} parent=1 // pred_check
      _
    $region11: #{tpu_custom_call.1} parent=1 // pred_check_branch
      %43 = sbr.rel (0) target = $region13
    $region12: #{tpu_custom_call.1} parent=1 // pred_region
      %45 = vsyncadd [#allocation7], 0
      %s47 = sshll.u32 %s2, 4
      %s48 = int_to_ptr.hbm [resolvable:$true] %s47
      %s49 = sshll.u32 [#allocation8], 4
      %s50 = int_to_ptr.vmem [resolvable:$true] %s49
      %52 = dma.hbm_to_vmem [thread:$0]  %s48, 32, %s50, [#allocation7]
    $region13: #{tpu_custom_call.1} parent=1 // pred_fallthru
      _
    // Predicated region
    $region14: #{tpu_custom_call.1} parent=1 // pred_check
      _
    $region15: #{tpu_custom_call.1} parent=1 // pred_check_branch
      %54 = sbr.rel (0) target = $region17
    $region16: #{tpu_custom_call.1} parent=1 // pred_region
      %56 = vsyncadd [#allocation10], 0
      %s57 = sshll.u32 %s3, 4
      %s58 = int_to_ptr.hbm [resolvable:$true] %s57
      %s59 = sshll.u32 [#allocation9], 4
      %s60 = int_to_ptr.vmem [resolvable:$true] %s59
      %65 = dma.hbm_to_vmem [thread:$0]  %s58, 2048, %s60, [#allocation10], 64, 64, 4
    $region17: #{tpu_custom_call.1} parent=1 // pred_fallthru
      _
    // Predicated region
    $region18: #{tpu_custom_call.1} parent=1 // pred_check
      _
    $region19: #{tpu_custom_call.1} parent=1 // pred_check_branch
      %67 = sbr.rel (0) target = $region21
    $region20: #{tpu_custom_call.1} parent=1 // pred_region
      _
    $region21: #{tpu_custom_call.1} parent=1 // pred_fallthru
      _
    // Predicated region
    $region22: #{tpu_custom_call.1} parent=1 // pred_check
      _
    $region23: #{tpu_custom_call.1} parent=1 // pred_check_branch
      %69 = sbr.rel (0) target = $region25
    $region24: #{tpu_custom_call.1} parent=1 // pred_region
      _
    $region25: #{tpu_custom_call.1} parent=1 // pred_fallthru
      _
    // Predicated region
    $region26: #{tpu_custom_call.1} parent=1 // pred_check
      _
    $region27: #{tpu_custom_call.1} parent=1 // pred_check_branch
      %71 = sbr.rel (0) target = $region29
    $region28: #{tpu_custom_call.1} parent=1 // pred_region
      _
    $region29: #{tpu_custom_call.1} parent=1 // pred_fallthru
      _
    // Predicated region
    $region30: #{tpu_custom_call.1} parent=1 // pred_check
      _
    $region31: #{tpu_custom_call.1} parent=1 // pred_check_branch
      %73 = sbr.rel (0) target = $region33
    $region32: #{tpu_custom_call.1} parent=1 // pred_region
      %75 = dma.done [#allocation4], 2048
    $region33: #{tpu_custom_call.1} parent=1 // pred_fallthru
      _
    // Predicated region
    $region34: #{tpu_custom_call.1} parent=1 // pred_check
      _
    $region35: #{tpu_custom_call.1} parent=1 // pred_check_branch
      %77 = sbr.rel (0) target = $region37
    $region36: #{tpu_custom_call.1} parent=1 // pred_region
      %79 = dma.done [#allocation7], 2048
    $region37: #{tpu_custom_call.1} parent=1 // pred_fallthru
      _
    // Predicated region
    $region38: #{tpu_custom_call.1} parent=1 // pred_check
      _
    $region39: #{tpu_custom_call.1} parent=1 // pred_check_branch
      %81 = sbr.rel (0) target = $region41
    $region40: #{tpu_custom_call.1} parent=1 // pred_region
      %83 = dma.done [#allocation7], 32
    $region41: #{tpu_custom_call.1} parent=1 // pred_fallthru
      _
    // Predicated region
    $region42: #{tpu_custom_call.1} parent=1 // pred_check
      _
    $region43: #{tpu_custom_call.1} parent=1 // pred_check_branch
      %85 = sbr.rel (0) target = $region45
    $region44: #{tpu_custom_call.1} parent=1 // pred_region
      %87 = dma.done [#allocation10], 2048
    $region45: #{tpu_custom_call.1} parent=1 // pred_fallthru
      _
    %p88 = scmp.eq.s32.totalorder 0, 0
    // Predicated region
    $region46: #{tpu_custom_call.1} parent=1 // pred_check
      %p89 = pneg %p88
    $region47: #{tpu_custom_call.1} parent=1 // pred_check_branch
      %91 = sbr.rel (%p89) target = $region49
    $region48: #{tpu_custom_call.1} parent=1 // pred_region
      %92 = vst [vmem:[#allocation11] sm:$0xff] 0.0
      %93 = vst [vmem:[#allocation11 + $0x8] sm:$0xff] 0.0
      %94 = vst [vmem:[#allocation11 + $0x10] sm:$0xff] 0.0
      %95 = vst [vmem:[#allocation11 + $0x18] sm:$0xff] 0.0
      %96 = vst [vmem:[#allocation11 + $0x20] sm:$0xff] 0.0
      %97 = vst [vmem:[#allocation11 + $0x28] sm:$0xff] 0.0
      %98 = vst [vmem:[#allocation11 + $0x30] sm:$0xff] 0.0
      %99 = vst [vmem:[#allocation11 + $0x38] sm:$0xff] 0.0
      %100 = vst [vmem:[#allocation11 + $0x40] sm:$0xff] 0.0
      %101 = vst [vmem:[#allocation11 + $0x48] sm:$0xff] 0.0
      %102 = vst [vmem:[#allocation11 + $0x50] sm:$0xff] 0.0
      %103 = vst [vmem:[#allocation11 + $0x58] sm:$0xff] 0.0
      %104 = vst [vmem:[#allocation11 + $0x60] sm:$0xff] 0.0
      %105 = vst [vmem:[#allocation11 + $0x68] sm:$0xff] 0.0
      %106 = vst [vmem:[#allocation11 + $0x70] sm:$0xff] 0.0
      %107 = vst [vmem:[#allocation11 + $0x78] sm:$0xff] 0.0
      %v108 = vld [vmem:[#allocation3] sm:$0xff]
      %v109 = vld [vmem:[#allocation3 + $0x8] sm:$0xff]
      %v110 = vld [vmem:[#allocation3 + $0x10] sm:$0xff]
      %v111 = vld [vmem:[#allocation3 + $0x18] sm:$0xff]
      %v112 = vld [vmem:[#allocation3 + $0x20] sm:$0xff]
      %v113 = vld [vmem:[#allocation3 + $0x28] sm:$0xff]
      %v114 = vld [vmem:[#allocation3 + $0x30] sm:$0xff]
      %v115 = vld [vmem:[#allocation3 + $0x38] sm:$0xff]
      %v116 = vld [vmem:[#allocation3 + $0x40] sm:$0xff]
      %v117 = vld [vmem:[#allocation3 + $0x48] sm:$0xff]
      %v118 = vld [vmem:[#allocation3 + $0x50] sm:$0xff]
      %v119 = vld [vmem:[#allocation3 + $0x58] sm:$0xff]
      %v120 = vld [vmem:[#allocation3 + $0x60] sm:$0xff]
      %v121 = vld [vmem:[#allocation3 + $0x68] sm:$0xff]
      %v122 = vld [vmem:[#allocation3 + $0x70] sm:$0xff]
      %v123 = vld [vmem:[#allocation3 + $0x78] sm:$0xff]
      %v124 = vpack.c.bf16 %v108, %v108
      %v125 = vpack.c.bf16 %v109, %v109
      %v126 = vpack.c.bf16 %v110, %v110
      %v127 = vpack.c.bf16 %v111, %v111
      %v128 = vpack.c.bf16 %v112, %v112
      %v129 = vpack.c.bf16 %v113, %v113
      %v130 = vpack.c.bf16 %v114, %v114
      %v131 = vpack.c.bf16 %v115, %v115
      %v132 = vpack.c.bf16 %v116, %v116
      %v133 = vpack.c.bf16 %v117, %v117
      %v134 = vpack.c.bf16 %v118, %v118
      %v135 = vpack.c.bf16 %v119, %v119
      %v136 = vpack.c.bf16 %v120, %v120
      %v137 = vpack.c.bf16 %v121, %v121
      %v138 = vpack.c.bf16 %v122, %v122
      %v139 = vpack.c.bf16 %v123, %v123
      %140 = vst [vmem:[#allocation2] sm:$0xf] %v124
      %141 = vst [vmem:[#allocation2 + $0x4] sm:$0xf] %v125
      %142 = vst [vmem:[#allocation2 + $0x8] sm:$0xf] %v126
      %143 = vst [vmem:[#allocation2 + $0xc] sm:$0xf] %v127
      %144 = vst [vmem:[#allocation2 + $0x10] sm:$0xf] %v128
      %145 = vst [vmem:[#allocation2 + $0x14] sm:$0xf] %v129
      %146 = vst [vmem:[#allocation2 + $0x18] sm:$0xf] %v130
      %147 = vst [vmem:[#allocation2 + $0x1c] sm:$0xf] %v131
      %148 = vst [vmem:[#allocation2 + $0x20] sm:$0xf] %v132
      %149 = vst [vmem:[#allocation2 + $0x24] sm:$0xf] %v133
      %150 = vst [vmem:[#allocation2 + $0x28] sm:$0xf] %v134
      %151 = vst [vmem:[#allocation2 + $0x2c] sm:$0xf] %v135
      %152 = vst [vmem:[#allocation2 + $0x30] sm:$0xf] %v136
      %153 = vst [vmem:[#allocation2 + $0x34] sm:$0xf] %v137
      %154 = vst [vmem:[#allocation2 + $0x38] sm:$0xf] %v138
      %155 = vst [vmem:[#allocation2 + $0x3c] sm:$0xf] %v139
    $region49: #{tpu_custom_call.1} parent=1 // pred_fallthru
      _
    %v156 = vld [vmem:[#allocation2] sm:$0xf]
    %v157 = vld [vmem:[#allocation2 + $0x4] sm:$0xf]
    %v158 = vld [vmem:[#allocation2 + $0x8] sm:$0xf]
    %v159 = vld [vmem:[#allocation2 + $0xc] sm:$0xf]
    %v160 = vld [vmem:[#allocation2 + $0x10] sm:$0xf]
    %v161 = vld [vmem:[#allocation2 + $0x14] sm:$0xf]
    %v162 = vld [vmem:[#allocation2 + $0x18] sm:$0xf]
    %v163 = vld [vmem:[#allocation2 + $0x1c] sm:$0xf]
    %v164 = vld [vmem:[#allocation2 + $0x20] sm:$0xf]
    %v165 = vld [vmem:[#allocation2 + $0x24] sm:$0xf]
    %v166 = vld [vmem:[#allocation2 + $0x28] sm:$0xf]
    %v167 = vld [vmem:[#allocation2 + $0x2c] sm:$0xf]
    %v168 = vld [vmem:[#allocation2 + $0x30] sm:$0xf]
    %v169 = vld [vmem:[#allocation2 + $0x34] sm:$0xf]
    %v170 = vld [vmem:[#allocation2 + $0x38] sm:$0xf]
    %v171 = vld [vmem:[#allocation2 + $0x3c] sm:$0xf]
    %v172 = vld [vmem:[#allocation8] sm:$0x3]
    %v173 = vld [vmem:[#allocation6] sm:$0xff]
    %v174 = vld [vmem:[#allocation6 + $0x8] sm:$0xff]
    %v175 = vld [vmem:[#allocation6 + $0x10] sm:$0xff]
    %v176 = vld [vmem:[#allocation6 + $0x18] sm:$0xff]
    %v177 = vld [vmem:[#allocation6 + $0x20] sm:$0xff]
    %v178 = vld [vmem:[#allocation6 + $0x28] sm:$0xff]
    %v179 = vld [vmem:[#allocation6 + $0x30] sm:$0xff]
    %v180 = vld [vmem:[#allocation6 + $0x38] sm:$0xff]
    %v181 = vld [vmem:[#allocation6 + $0x40] sm:$0xff]
    %v182 = vld [vmem:[#allocation6 + $0x48] sm:$0xff]
    %v183 = vld [vmem:[#allocation6 + $0x50] sm:$0xff]
    %v184 = vld [vmem:[#allocation6 + $0x58] sm:$0xff]
    %v185 = vld [vmem:[#allocation6 + $0x60] sm:$0xff]
    %v186 = vld [vmem:[#allocation6 + $0x68] sm:$0xff]
    %v187 = vld [vmem:[#allocation6 + $0x70] sm:$0xff]
    %v188 = vld [vmem:[#allocation6 + $0x78] sm:$0xff]
    %v190 = vperm.slane %v172, 0
    %v191 = vperm.slane %v172, 1
    %v210 = vunpack.c.l.b16 %v156
    %v211 = vunpack.c.l.b16 %v157
    %v212 = vunpack.c.l.b16 %v158
    %v213 = vunpack.c.l.b16 %v159
    %v214 = vunpack.c.l.b16 %v160
    %v215 = vunpack.c.l.b16 %v161
    %v216 = vunpack.c.l.b16 %v162
    %v217 = vunpack.c.l.b16 %v163
    %v218 = vunpack.c.l.b16 %v164
    %v219 = vunpack.c.l.b16 %v165
    %v220 = vunpack.c.l.b16 %v166
    %v221 = vunpack.c.l.b16 %v167
    %v222 = vunpack.c.l.b16 %v168
    %v223 = vunpack.c.l.b16 %v169
    %v224 = vunpack.c.l.b16 %v170
    %v225 = vunpack.c.l.b16 %v171
    %v226 = vpack.c.b16 %v211, %v210
    %v227 = vpack.c.b16 %v213, %v212
    %v228 = vpack.c.b16 %v215, %v214
    %v229 = vpack.c.b16 %v217, %v216
    %v230 = vpack.c.b16 %v219, %v218
    %v231 = vpack.c.b16 %v221, %v220
    %v232 = vpack.c.b16 %v223, %v222
    %v233 = vpack.c.b16 %v225, %v224
    %v258 = vunpack.c.l.b16 %v173
    %v259 = vunpack.c.h.b16 %v173
    %v260 = vunpack.c.l.b16 %v174
    %v261 = vunpack.c.h.b16 %v174
    %v262 = vunpack.c.l.b16 %v175
    %v263 = vunpack.c.h.b16 %v175
    %v264 = vunpack.c.l.b16 %v176
    %v265 = vunpack.c.h.b16 %v176
    %v266 = vunpack.c.l.b16 %v177
    %v267 = vunpack.c.h.b16 %v177
    %v268 = vunpack.c.l.b16 %v178
    %v269 = vunpack.c.h.b16 %v178
    %v270 = vunpack.c.l.b16 %v179
    %v271 = vunpack.c.h.b16 %v179
    %v272 = vunpack.c.l.b16 %v180
    %v273 = vunpack.c.h.b16 %v180
    %v274 = vunpack.c.l.b16 %v181
    %v275 = vunpack.c.h.b16 %v181
    %v276 = vunpack.c.l.b16 %v182
    %v277 = vunpack.c.h.b16 %v182
    %v278 = vunpack.c.l.b16 %v183
    %v279 = vunpack.c.h.b16 %v183
    %v280 = vunpack.c.l.b16 %v184
    %v281 = vunpack.c.h.b16 %v184
    %v282 = vunpack.c.l.b16 %v185
    %v283 = vunpack.c.h.b16 %v185
    %v284 = vunpack.c.l.b16 %v186
    %v285 = vunpack.c.h.b16 %v186
    %v286 = vunpack.c.l.b16 %v187
    %v287 = vunpack.c.h.b16 %v187
    %v288 = vunpack.c.l.b16 %v188
    %v289 = vunpack.c.h.b16 %v188
    %v290 = vpack.c.b16 %v260, %v258
    %v291 = vpack.c.b16 %v261, %v259
    %v292 = vpack.c.b16 %v264, %v262
    %v293 = vpack.c.b16 %v265, %v263
    %v294 = vpack.c.b16 %v268, %v266
    %v295 = vpack.c.b16 %v269, %v267
    %v296 = vpack.c.b16 %v272, %v270
    %v297 = vpack.c.b16 %v273, %v271
    %v298 = vpack.c.b16 %v276, %v274
    %v299 = vpack.c.b16 %v277, %v275
    %v300 = vpack.c.b16 %v280, %v278
    %v301 = vpack.c.b16 %v281, %v279
    %v302 = vpack.c.b16 %v284, %v282
    %v303 = vpack.c.b16 %v285, %v283
    %v304 = vpack.c.b16 %v288, %v286
    %v305 = vpack.c.b16 %v289, %v287
    %322 = vmatpush.bf16.msra.mxu0 %v304
    %323 = vmatpush.bf16.msra.mxu0 %v302
    %324 = vmatpush.bf16.msra.mxu0 %v300
    %325 = vmatpush.bf16.msra.mxu0 %v298
    %326 = vmatpush.bf16.msra.mxu0 %v296
    %327 = vmatpush.bf16.msra.mxu0 %v294
    %328 = vmatpush.bf16.msra.mxu0 %v292
    %329 = vmatpush.bf16.msra.mxu0 %v290
    %330 = vmatmul.bf16.gmra.mxu0 %v226
    %v331 = vpop.f32.mrf.mxu0
    %v332 = vadd.f32 %v190, %v331
    %v333 = vpop.f32.mrf.mxu0
    %v334 = vadd.f32 %v190, %v333
    %335 = vmatmul.bf16.gmra.mxu0 %v227
    %v336 = vpop.f32.mrf.mxu0
    %v337 = vadd.f32 %v190, %v336
    %v338 = vpop.f32.mrf.mxu0
    %v339 = vadd.f32 %v190, %v338
    %340 = vmatmul.bf16.gmra.mxu0 %v228
    %v341 = vpop.f32.mrf.mxu0
    %v342 = vadd.f32 %v190, %v341
    %v343 = vpop.f32.mrf.mxu0
    %v344 = vadd.f32 %v190, %v343
    %345 = vmatmul.bf16.gmra.mxu0 %v229
    %v346 = vpop.f32.mrf.mxu0
    %v347 = vadd.f32 %v190, %v346
    %v348 = vpop.f32.mrf.mxu0
    %v349 = vadd.f32 %v190, %v348
    %350 = vmatmul.bf16.gmra.mxu0 %v230
    %v351 = vpop.f32.mrf.mxu0
    %v352 = vadd.f32 %v190, %v351
    %v353 = vpop.f32.mrf.mxu0
    %v354 = vadd.f32 %v190, %v353
    %355 = vmatmul.bf16.gmra.mxu0 %v231
    %v356 = vpop.f32.mrf.mxu0
    %v357 = vadd.f32 %v190, %v356
    %v358 = vpop.f32.mrf.mxu0
    %v359 = vadd.f32 %v190, %v358
    %360 = vmatmul.bf16.gmra.mxu0 %v232
    %v361 = vpop.f32.mrf.mxu0
    %v362 = vadd.f32 %v190, %v361
    %v363 = vpop.f32.mrf.mxu0
    %v364 = vadd.f32 %v190, %v363
    %365 = vmatmul.bf16.gmra.mxu0 %v233
    %v366 = vpop.f32.mrf.mxu0
    %v367 = vadd.f32 %v190, %v366
    %v368 = vpop.f32.mrf.mxu0
    %v369 = vadd.f32 %v190, %v368
    %370 = vdwg.mxu0
    %371 = vmatpush.bf16.msra.mxu0 %v305
    %372 = vmatpush.bf16.msra.mxu0 %v303
    %373 = vmatpush.bf16.msra.mxu0 %v301
    %374 = vmatpush.bf16.msra.mxu0 %v299
    %375 = vmatpush.bf16.msra.mxu0 %v297
    %376 = vmatpush.bf16.msra.mxu0 %v295
    %377 = vmatpush.bf16.msra.mxu0 %v293
    %378 = vmatpush.bf16.msra.mxu0 %v291
    %379 = vmatmul.bf16.gmra.mxu0 %v226
    %v380 = vpop.f32.mrf.mxu0
    %v381 = vadd.f32 %v191, %v380
    %v382 = vpop.f32.mrf.mxu0
    %v383 = vadd.f32 %v191, %v382
    %384 = vmatmul.bf16.gmra.mxu0 %v227
    %v385 = vpop.f32.mrf.mxu0
    %v386 = vadd.f32 %v191, %v385
    %v387 = vpop.f32.mrf.mxu0
    %v388 = vadd.f32 %v191, %v387
    %389 = vmatmul.bf16.gmra.mxu0 %v228
    %v390 = vpop.f32.mrf.mxu0
    %v391 = vadd.f32 %v191, %v390
    %v392 = vpop.f32.mrf.mxu0
    %v393 = vadd.f32 %v191, %v392
    %394 = vmatmul.bf16.gmra.mxu0 %v229
    %v395 = vpop.f32.mrf.mxu0
    %v396 = vadd.f32 %v191, %v395
    %v397 = vpop.f32.mrf.mxu0
    %v398 = vadd.f32 %v191, %v397
    %399 = vmatmul.bf16.gmra.mxu0 %v230
    %v400 = vpop.f32.mrf.mxu0
    %v401 = vadd.f32 %v191, %v400
    %v402 = vpop.f32.mrf.mxu0
    %v403 = vadd.f32 %v191, %v402
    %404 = vmatmul.bf16.gmra.mxu0 %v231
    %v405 = vpop.f32.mrf.mxu0
    %v406 = vadd.f32 %v191, %v405
    %v407 = vpop.f32.mrf.mxu0
    %v408 = vadd.f32 %v191, %v407
    %409 = vmatmul.bf16.gmra.mxu0 %v232
    %v410 = vpop.f32.mrf.mxu0
    %v411 = vadd.f32 %v191, %v410
    %v412 = vpop.f32.mrf.mxu0
    %v413 = vadd.f32 %v191, %v412
    %414 = vmatmul.bf16.gmra.mxu0 %v233
    %v415 = vpop.f32.mrf.mxu0
    %v416 = vadd.f32 %v191, %v415
    %v417 = vpop.f32.mrf.mxu0
    %v418 = vadd.f32 %v191, %v417
    %419 = vdwg.mxu0
    %v420 = vmax.f32 %v332, 0.0
    %v421 = vmax.f32 %v381, 0.0
    %v422 = vmax.f32 %v334, 0.0
    %v423 = vmax.f32 %v383, 0.0
    %v424 = vmax.f32 %v337, 0.0
    %v425 = vmax.f32 %v386, 0.0
    %v426 = vmax.f32 %v339, 0.0
    %v427 = vmax.f32 %v388, 0.0
    %v428 = vmax.f32 %v342, 0.0
    %v429 = vmax.f32 %v391, 0.0
    %v430 = vmax.f32 %v344, 0.0
    %v431 = vmax.f32 %v393, 0.0
    %v432 = vmax.f32 %v347, 0.0
    %v433 = vmax.f32 %v396, 0.0
    %v434 = vmax.f32 %v349, 0.0
    %v435 = vmax.f32 %v398, 0.0
    %v436 = vmax.f32 %v352, 0.0
    %v437 = vmax.f32 %v401, 0.0
    %v438 = vmax.f32 %v354, 0.0
    %v439 = vmax.f32 %v403, 0.0
    %v440 = vmax.f32 %v357, 0.0
    %v441 = vmax.f32 %v406, 0.0
    %v442 = vmax.f32 %v359, 0.0
    %v443 = vmax.f32 %v408, 0.0
    %v444 = vmax.f32 %v362, 0.0
    %v445 = vmax.f32 %v411, 0.0
    %v446 = vmax.f32 %v364, 0.0
    %v447 = vmax.f32 %v413, 0.0
    %v448 = vmax.f32 %v367, 0.0
    %v449 = vmax.f32 %v416, 0.0
    %v450 = vmax.f32 %v369, 0.0
    %v451 = vmax.f32 %v418, 0.0
    %v452 = vld [vmem:[#allocation11] sm:$0xff]
    %v453 = vld [vmem:[#allocation11 + $0x8] sm:$0xff]
    %v454 = vld [vmem:[#allocation11 + $0x10] sm:$0xff]
    %v455 = vld [vmem:[#allocation11 + $0x18] sm:$0xff]
    %v456 = vld [vmem:[#allocation11 + $0x20] sm:$0xff]
    %v457 = vld [vmem:[#allocation11 + $0x28] sm:$0xff]
    %v458 = vld [vmem:[#allocation11 + $0x30] sm:$0xff]
    %v459 = vld [vmem:[#allocation11 + $0x38] sm:$0xff]
    %v460 = vld [vmem:[#allocation11 + $0x40] sm:$0xff]
    %v461 = vld [vmem:[#allocation11 + $0x48] sm:$0xff]
    %v462 = vld [vmem:[#allocation11 + $0x50] sm:$0xff]
    %v463 = vld [vmem:[#allocation11 + $0x58] sm:$0xff]
    %v464 = vld [vmem:[#allocation11 + $0x60] sm:$0xff]
    %v465 = vld [vmem:[#allocation11 + $0x68] sm:$0xff]
    %v466 = vld [vmem:[#allocation11 + $0x70] sm:$0xff]
    %v467 = vld [vmem:[#allocation11 + $0x78] sm:$0xff]
    %v468 = vpack.c.bf16 %v422, %v420
    %v469 = vpack.c.bf16 %v423, %v421
    %v470 = vpack.c.bf16 %v426, %v424
    %v471 = vpack.c.bf16 %v427, %v425
    %v472 = vpack.c.bf16 %v430, %v428
    %v473 = vpack.c.bf16 %v431, %v429
    %v474 = vpack.c.bf16 %v434, %v432
    %v475 = vpack.c.bf16 %v435, %v433
    %v476 = vpack.c.bf16 %v438, %v436
    %v477 = vpack.c.bf16 %v439, %v437
    %v478 = vpack.c.bf16 %v442, %v440
    %v479 = vpack.c.bf16 %v443, %v441
    %v480 = vpack.c.bf16 %v446, %v444
    %v481 = vpack.c.bf16 %v447, %v445
    %v482 = vpack.c.bf16 %v450, %v448
    %v483 = vpack.c.bf16 %v451, %v449
    %v484 = vld [vmem:[#allocation9] sm:$0xf]
    %v485 = vld [vmem:[#allocation9 + $0x4] sm:$0xf]
    %v486 = vld [vmem:[#allocation9 + $0x8] sm:$0xf]
    %v487 = vld [vmem:[#allocation9 + $0xc] sm:$0xf]
    %v488 = vld [vmem:[#allocation9 + $0x10] sm:$0xf]
    %v489 = vld [vmem:[#allocation9 + $0x14] sm:$0xf]
    %v490 = vld [vmem:[#allocation9 + $0x18] sm:$0xf]
    %v491 = vld [vmem:[#allocation9 + $0x1c] sm:$0xf]
    %v492 = vld [vmem:[#allocation9 + $0x20] sm:$0xf]
    %v493 = vld [vmem:[#allocation9 + $0x24] sm:$0xf]
    %v494 = vld [vmem:[#allocation9 + $0x28] sm:$0xf]
    %v495 = vld [vmem:[#allocation9 + $0x2c] sm:$0xf]
    %v496 = vld [vmem:[#allocation9 + $0x30] sm:$0xf]
    %v497 = vld [vmem:[#allocation9 + $0x34] sm:$0xf]
    %v498 = vld [vmem:[#allocation9 + $0x38] sm:$0xf]
    %v499 = vld [vmem:[#allocation9 + $0x3c] sm:$0xf]
    %v500 = vld [vmem:[#allocation9 + $0x40] sm:$0xf]
    %v501 = vld [vmem:[#allocation9 + $0x44] sm:$0xf]
    %v502 = vld [vmem:[#allocation9 + $0x48] sm:$0xf]
    %v503 = vld [vmem:[#allocation9 + $0x4c] sm:$0xf]
    %v504 = vld [vmem:[#allocation9 + $0x50] sm:$0xf]
    %v505 = vld [vmem:[#allocation9 + $0x54] sm:$0xf]
    %v506 = vld [vmem:[#allocation9 + $0x58] sm:$0xf]
    %v507 = vld [vmem:[#allocation9 + $0x5c] sm:$0xf]
    %v508 = vld [vmem:[#allocation9 + $0x60] sm:$0xf]
    %v509 = vld [vmem:[#allocation9 + $0x64] sm:$0xf]
    %v510 = vld [vmem:[#allocation9 + $0x68] sm:$0xf]
    %v511 = vld [vmem:[#allocation9 + $0x6c] sm:$0xf]
    %v512 = vld [vmem:[#allocation9 + $0x70] sm:$0xf]
    %v513 = vld [vmem:[#allocation9 + $0x74] sm:$0xf]
    %v514 = vld [vmem:[#allocation9 + $0x78] sm:$0xf]
    %v515 = vld [vmem:[#allocation9 + $0x7c] sm:$0xf]
    %v548 = vunpack.c.l.b16 %v484
    %v549 = vunpack.c.l.b16 %v485
    %v550 = vunpack.c.l.b16 %v486
    %v551 = vunpack.c.l.b16 %v487
    %v552 = vunpack.c.l.b16 %v488
    %v553 = vunpack.c.l.b16 %v489
    %v554 = vunpack.c.l.b16 %v490
    %v555 = vunpack.c.l.b16 %v491
    %v556 = vunpack.c.l.b16 %v492
    %v557 = vunpack.c.l.b16 %v493
    %v558 = vunpack.c.l.b16 %v494
    %v559 = vunpack.c.l.b16 %v495
    %v560 = vunpack.c.l.b16 %v496
    %v561 = vunpack.c.l.b16 %v497
    %v562 = vunpack.c.l.b16 %v498
    %v563 = vunpack.c.l.b16 %v499
    %v564 = vunpack.c.l.b16 %v500
    %v565 = vunpack.c.l.b16 %v501
    %v566 = vunpack.c.l.b16 %v502
    %v567 = vunpack.c.l.b16 %v503
    %v568 = vunpack.c.l.b16 %v504
    %v569 = vunpack.c.l.b16 %v505
    %v570 = vunpack.c.l.b16 %v506
    %v571 = vunpack.c.l.b16 %v507
    %v572 = vunpack.c.l.b16 %v508
    %v573 = vunpack.c.l.b16 %v509
    %v574 = vunpack.c.l.b16 %v510
    %v575 = vunpack.c.l.b16 %v511
    %v576 = vunpack.c.l.b16 %v512
    %v577 = vunpack.c.l.b16 %v513
    %v578 = vunpack.c.l.b16 %v514
    %v579 = vunpack.c.l.b16 %v515
    %v580 = vpack.c.b16 %v549, %v548
    %v581 = vpack.c.b16 %v551, %v550
    %v582 = vpack.c.b16 %v553, %v552
    %v583 = vpack.c.b16 %v555, %v554
    %v584 = vpack.c.b16 %v557, %v556
    %v585 = vpack.c.b16 %v559, %v558
    %v586 = vpack.c.b16 %v561, %v560
    %v587 = vpack.c.b16 %v563, %v562
    %v588 = vpack.c.b16 %v565, %v564
    %v589 = vpack.c.b16 %v567, %v566
    %v590 = vpack.c.b16 %v569, %v568
    %v591 = vpack.c.b16 %v571, %v570
    %v592 = vpack.c.b16 %v573, %v572
    %v593 = vpack.c.b16 %v575, %v574
    %v594 = vpack.c.b16 %v577, %v576
    %v595 = vpack.c.b16 %v579, %v578
    %612 = vmatpush.bf16.msra.mxu0 %v587
    %613 = vmatpush.bf16.msra.mxu0 %v586
    %614 = vmatpush.bf16.msra.mxu0 %v585
    %615 = vmatpush.bf16.msra.mxu0 %v584
    %616 = vmatpush.bf16.msra.mxu0 %v583
    %617 = vmatpush.bf16.msra.mxu0 %v582
    %618 = vmatpush.bf16.msra.mxu0 %v581
    %619 = vmatpush.bf16.msra.mxu0 %v580
    %620 = vmatmul.bf16.gmra.mxu0 %v468
    %v621 = vpop.f32.mrf.mxu0
    %v622 = vadd.f32 0.0, %v621
    %v623 = vpop.f32.mrf.mxu0
    %v624 = vadd.f32 0.0, %v623
    %625 = vmatmul.bf16.gmra.mxu0 %v470
    %v626 = vpop.f32.mrf.mxu0
    %v627 = vadd.f32 0.0, %v626
    %v628 = vpop.f32.mrf.mxu0
    %v629 = vadd.f32 0.0, %v628
    %630 = vmatmul.bf16.gmra.mxu0 %v472
    %v631 = vpop.f32.mrf.mxu0
    %v632 = vadd.f32 0.0, %v631
    %v633 = vpop.f32.mrf.mxu0
    %v634 = vadd.f32 0.0, %v633
    %635 = vmatmul.bf16.gmra.mxu0 %v474
    %v636 = vpop.f32.mrf.mxu0
    %v637 = vadd.f32 0.0, %v636
    %v638 = vpop.f32.mrf.mxu0
    %v639 = vadd.f32 0.0, %v638
    %640 = vmatmul.bf16.gmra.mxu0 %v476
    %v641 = vpop.f32.mrf.mxu0
    %v642 = vadd.f32 0.0, %v641
    %v643 = vpop.f32.mrf.mxu0
    %v644 = vadd.f32 0.0, %v643
    %645 = vmatmul.bf16.gmra.mxu0 %v478
    %v646 = vpop.f32.mrf.mxu0
    %v647 = vadd.f32 0.0, %v646
    %v648 = vpop.f32.mrf.mxu0
    %v649 = vadd.f32 0.0, %v648
    %650 = vmatmul.bf16.gmra.mxu0 %v480
    %v651 = vpop.f32.mrf.mxu0
    %v652 = vadd.f32 0.0, %v651
    %v653 = vpop.f32.mrf.mxu0
    %v654 = vadd.f32 0.0, %v653
    %655 = vmatmul.bf16.gmra.mxu0 %v482
    %v656 = vpop.f32.mrf.mxu0
    %v657 = vadd.f32 0.0, %v656
    %v658 = vpop.f32.mrf.mxu0
    %v659 = vadd.f32 0.0, %v658
    %660 = vdwg.mxu0
    %661 = vmatpush.bf16.msra.mxu0 %v595
    %662 = vmatpush.bf16.msra.mxu0 %v594
    %663 = vmatpush.bf16.msra.mxu0 %v593
    %664 = vmatpush.bf16.msra.mxu0 %v592
    %665 = vmatpush.bf16.msra.mxu0 %v591
    %666 = vmatpush.bf16.msra.mxu0 %v590
    %667 = vmatpush.bf16.msra.mxu0 %v589
    %668 = vmatpush.bf16.msra.mxu0 %v588
    %669 = vmatmul.bf16.gmra.mxu0 %v469
    %v670 = vpop.f32.mrf.mxu0
    %v671 = vadd.f32 %v622, %v670
    %v672 = vpop.f32.mrf.mxu0
    %v673 = vadd.f32 %v624, %v672
    %674 = vmatmul.bf16.gmra.mxu0 %v471
    %v675 = vpop.f32.mrf.mxu0
    %v676 = vadd.f32 %v627, %v675
    %v677 = vpop.f32.mrf.mxu0
    %v678 = vadd.f32 %v629, %v677
    %679 = vmatmul.bf16.gmra.mxu0 %v473
    %v680 = vpop.f32.mrf.mxu0
    %v681 = vadd.f32 %v632, %v680
    %v682 = vpop.f32.mrf.mxu0
    %v683 = vadd.f32 %v634, %v682
    %684 = vmatmul.bf16.gmra.mxu0 %v475
    %v685 = vpop.f32.mrf.mxu0
    %v686 = vadd.f32 %v637, %v685
    %v687 = vpop.f32.mrf.mxu0
    %v688 = vadd.f32 %v639, %v687
    %689 = vmatmul.bf16.gmra.mxu0 %v477
    %v690 = vpop.f32.mrf.mxu0
    %v691 = vadd.f32 %v642, %v690
    %v692 = vpop.f32.mrf.mxu0
    %v693 = vadd.f32 %v644, %v692
    %694 = vmatmul.bf16.gmra.mxu0 %v479
    %v695 = vpop.f32.mrf.mxu0
    %v696 = vadd.f32 %v647, %v695
    %v697 = vpop.f32.mrf.mxu0
    %v698 = vadd.f32 %v649, %v697
    %699 = vmatmul.bf16.gmra.mxu0 %v481
    %v700 = vpop.f32.mrf.mxu0
    %v701 = vadd.f32 %v652, %v700
    %v702 = vpop.f32.mrf.mxu0
    %v703 = vadd.f32 %v654, %v702
    %704 = vmatmul.bf16.gmra.mxu0 %v483
    %v705 = vpop.f32.mrf.mxu0
    %v706 = vadd.f32 %v657, %v705
    %v707 = vpop.f32.mrf.mxu0
    %v708 = vadd.f32 %v659, %v707
    %709 = vdwg.mxu0
    %v710 = vadd.f32 %v452, %v671
    %v711 = vadd.f32 %v453, %v673
    %v712 = vadd.f32 %v454, %v676
    %v713 = vadd.f32 %v455, %v678
    %v714 = vadd.f32 %v456, %v681
    %v715 = vadd.f32 %v457, %v683
    %v716 = vadd.f32 %v458, %v686
    %v717 = vadd.f32 %v459, %v688
    %v718 = vadd.f32 %v460, %v691
    %v719 = vadd.f32 %v461, %v693
    %v720 = vadd.f32 %v462, %v696
    %v721 = vadd.f32 %v463, %v698
    %v722 = vadd.f32 %v464, %v701
    %v723 = vadd.f32 %v465, %v703
    %v724 = vadd.f32 %v466, %v706
    %v725 = vadd.f32 %v467, %v708
    %726 = vst [vmem:[#allocation11] sm:$0xff] %v710
    %727 = vst [vmem:[#allocation11 + $0x8] sm:$0xff] %v711
    %728 = vst [vmem:[#allocation11 + $0x10] sm:$0xff] %v712
    %729 = vst [vmem:[#allocation11 + $0x18] sm:$0xff] %v713
    %730 = vst [vmem:[#allocation11 + $0x20] sm:$0xff] %v714
    %731 = vst [vmem:[#allocation11 + $0x28] sm:$0xff] %v715
    %732 = vst [vmem:[#allocation11 + $0x30] sm:$0xff] %v716
    %733 = vst [vmem:[#allocation11 + $0x38] sm:$0xff] %v717
    %734 = vst [vmem:[#allocation11 + $0x40] sm:$0xff] %v718
    %735 = vst [vmem:[#allocation11 + $0x48] sm:$0xff] %v719
    %736 = vst [vmem:[#allocation11 + $0x50] sm:$0xff] %v720
    %737 = vst [vmem:[#allocation11 + $0x58] sm:$0xff] %v721
    %738 = vst [vmem:[#allocation11 + $0x60] sm:$0xff] %v722
    %739 = vst [vmem:[#allocation11 + $0x68] sm:$0xff] %v723
    %740 = vst [vmem:[#allocation11 + $0x70] sm:$0xff] %v724
    %741 = vst [vmem:[#allocation11 + $0x78] sm:$0xff] %v725
    // Predicated region
    $region50: #{tpu_custom_call.1} parent=1 // pred_check
      %p742 = pneg %p88
    $region51: #{tpu_custom_call.1} parent=1 // pred_check_branch
      %744 = sbr.rel (%p742) target = $region53
    $region52: #{tpu_custom_call.1} parent=1 // pred_region
      %v745 = vld [vmem:[#allocation3] sm:$0xff]
      %v746 = vld [vmem:[#allocation3 + $0x8] sm:$0xff]
      %v747 = vld [vmem:[#allocation3 + $0x10] sm:$0xff]
      %v748 = vld [vmem:[#allocation3 + $0x18] sm:$0xff]
      %v749 = vld [vmem:[#allocation3 + $0x20] sm:$0xff]
      %v750 = vld [vmem:[#allocation3 + $0x28] sm:$0xff]
      %v751 = vld [vmem:[#allocation3 + $0x30] sm:$0xff]
      %v752 = vld [vmem:[#allocation3 + $0x38] sm:$0xff]
      %v753 = vld [vmem:[#allocation3 + $0x40] sm:$0xff]
      %v754 = vld [vmem:[#allocation3 + $0x48] sm:$0xff]
      %v755 = vld [vmem:[#allocation3 + $0x50] sm:$0xff]
      %v756 = vld [vmem:[#allocation3 + $0x58] sm:$0xff]
      %v757 = vld [vmem:[#allocation3 + $0x60] sm:$0xff]
      %v758 = vld [vmem:[#allocation3 + $0x68] sm:$0xff]
      %v759 = vld [vmem:[#allocation3 + $0x70] sm:$0xff]
      %v760 = vld [vmem:[#allocation3 + $0x78] sm:$0xff]
      %v761 = vld [vmem:[#allocation11] sm:$0xff]
      %v762 = vld [vmem:[#allocation11 + $0x8] sm:$0xff]
      %v763 = vld [vmem:[#allocation11 + $0x10] sm:$0xff]
      %v764 = vld [vmem:[#allocation11 + $0x18] sm:$0xff]
      %v765 = vld [vmem:[#allocation11 + $0x20] sm:$0xff]
      %v766 = vld [vmem:[#allocation11 + $0x28] sm:$0xff]
      %v767 = vld [vmem:[#allocation11 + $0x30] sm:$0xff]
      %v768 = vld [vmem:[#allocation11 + $0x38] sm:$0xff]
      %v769 = vld [vmem:[#allocation11 + $0x40] sm:$0xff]
      %v770 = vld [vmem:[#allocation11 + $0x48] sm:$0xff]
      %v771 = vld [vmem:[#allocation11 + $0x50] sm:$0xff]
      %v772 = vld [vmem:[#allocation11 + $0x58] sm:$0xff]
      %v773 = vld [vmem:[#allocation11 + $0x60] sm:$0xff]
      %v774 = vld [vmem:[#allocation11 + $0x68] sm:$0xff]
      %v775 = vld [vmem:[#allocation11 + $0x70] sm:$0xff]
      %v776 = vld [vmem:[#allocation11 + $0x78] sm:$0xff]
      %v777 = vld [vmem:[%s4] sm:$0x1]
      %v779 = vperm.slane %v777, 0
      %v781 = vadd.f32 %v761, %v779
      %v782 = vadd.f32 %v762, %v779
      %v783 = vadd.f32 %v763, %v779
      %v784 = vadd.f32 %v764, %v779
      %v785 = vadd.f32 %v765, %v779
      %v786 = vadd.f32 %v766, %v779
      %v787 = vadd.f32 %v767, %v779
      %v788 = vadd.f32 %v768, %v779
      %v789 = vadd.f32 %v769, %v779
      %v790 = vadd.f32 %v770, %v779
      %v791 = vadd.f32 %v771, %v779
      %v792 = vadd.f32 %v772, %v779
      %v793 = vadd.f32 %v773, %v779
      %v794 = vadd.f32 %v774, %v779
      %v795 = vadd.f32 %v775, %v779
      %v796 = vadd.f32 %v776, %v779
      %v797 = vadd.f32 %v745, %v781
      %v798 = vadd.f32 %v746, %v782
      %v799 = vadd.f32 %v747, %v783
      %v800 = vadd.f32 %v748, %v784
      %v801 = vadd.f32 %v749, %v785
      %v802 = vadd.f32 %v750, %v786
      %v803 = vadd.f32 %v751, %v787
      %v804 = vadd.f32 %v752, %v788
      %v805 = vadd.f32 %v753, %v789
      %v806 = vadd.f32 %v754, %v790
      %v807 = vadd.f32 %v755, %v791
      %v808 = vadd.f32 %v756, %v792
      %v809 = vadd.f32 %v757, %v793
      %v810 = vadd.f32 %v758, %v794
      %v811 = vadd.f32 %v759, %v795
      %v812 = vadd.f32 %v760, %v796
      %813 = vadd.xlane.f32.xlu0 %v797
      %v814 = vpop.xlane.xlu0 %813
      %815 = vadd.xlane.f32.xlu0 %v798
      %v816 = vpop.xlane.xlu0 %815
      %817 = vadd.xlane.f32.xlu0 %v799
      %v818 = vpop.xlane.xlu0 %817
      %819 = vadd.xlane.f32.xlu0 %v800
      %v820 = vpop.xlane.xlu0 %819
      %821 = vadd.xlane.f32.xlu0 %v801
      %v822 = vpop.xlane.xlu0 %821
      %823 = vadd.xlane.f32.xlu0 %v802
      %v824 = vpop.xlane.xlu0 %823
      %825 = vadd.xlane.f32.xlu0 %v803
      %v826 = vpop.xlane.xlu0 %825
      %827 = vadd.xlane.f32.xlu0 %v804
      %v828 = vpop.xlane.xlu0 %827
      %829 = vadd.xlane.f32.xlu0 %v805
      %v830 = vpop.xlane.xlu0 %829
      %831 = vadd.xlane.f32.xlu0 %v806
      %v832 = vpop.xlane.xlu0 %831
      %833 = vadd.xlane.f32.xlu0 %v807
      %v834 = vpop.xlane.xlu0 %833
      %835 = vadd.xlane.f32.xlu0 %v808
      %v836 = vpop.xlane.xlu0 %835
      %837 = vadd.xlane.f32.xlu0 %v809
      %v838 = vpop.xlane.xlu0 %837
      %839 = vadd.xlane.f32.xlu0 %v810
      %v840 = vpop.xlane.xlu0 %839
      %841 = vadd.xlane.f32.xlu0 %v811
      %v842 = vpop.xlane.xlu0 %841
      %843 = vadd.xlane.f32.xlu0 %v812
      %v844 = vpop.xlane.xlu0 %843
      %v845 = vrcp.pop 128.0
      %v846 = vmul.f32 128.0, %v845
      %v847 = vsub.f32 1.0, %v846
      %v848 = vmul.f32 %v845, %v847
      %v849 = vadd.f32 %v845, %v848
      %vm850 = vweird.f32 %v845
      %v851 = vsel %vm850, %v845, %v849
      %v852 = vmul.f32 %v814, %v851
      %v853 = vmul.f32 %v816, %v851
      %v854 = vmul.f32 %v818, %v851
      %v855 = vmul.f32 %v820, %v851
      %v856 = vmul.f32 %v822, %v851
      %v857 = vmul.f32 %v824, %v851
      %v858 = vmul.f32 %v826, %v851
      %v859 = vmul.f32 %v828, %v851
      %v860 = vmul.f32 %v830, %v851
      %v861 = vmul.f32 %v832, %v851
      %v862 = vmul.f32 %v834, %v851
      %v863 = vmul.f32 %v836, %v851
      %v864 = vmul.f32 %v838, %v851
      %v865 = vmul.f32 %v840, %v851
      %v866 = vmul.f32 %v842, %v851
      %v867 = vmul.f32 %v844, %v851
      %v868 = vsub.f32 %v797, %v852
      %v869 = vsub.f32 %v798, %v853
      %v870 = vsub.f32 %v799, %v854
      %v871 = vsub.f32 %v800, %v855
      %v872 = vsub.f32 %v801, %v856
      %v873 = vsub.f32 %v802, %v857
      %v874 = vsub.f32 %v803, %v858
      %v875 = vsub.f32 %v804, %v859
      %v876 = vsub.f32 %v805, %v860
      %v877 = vsub.f32 %v806, %v861
      %v878 = vsub.f32 %v807, %v862
      %v879 = vsub.f32 %v808, %v863
      %v880 = vsub.f32 %v809, %v864
      %v881 = vsub.f32 %v810, %v865
      %v882 = vsub.f32 %v811, %v866
      %v883 = vsub.f32 %v812, %v867
      %v884 = vmul.f32 %v868, %v868
      %v885 = vmul.f32 %v869, %v869
      %v886 = vmul.f32 %v870, %v870
      %v887 = vmul.f32 %v871, %v871
      %v888 = vmul.f32 %v872, %v872
      %v889 = vmul.f32 %v873, %v873
      %v890 = vmul.f32 %v874, %v874
      %v891 = vmul.f32 %v875, %v875
      %v892 = vmul.f32 %v876, %v876
      %v893 = vmul.f32 %v877, %v877
      %v894 = vmul.f32 %v878, %v878
      %v895 = vmul.f32 %v879, %v879
      %v896 = vmul.f32 %v880, %v880
      %v897 = vmul.f32 %v881, %v881
      %v898 = vmul.f32 %v882, %v882
      %v899 = vmul.f32 %v883, %v883
      %900 = vadd.xlane.f32.xlu0 %v884
      %v901 = vpop.xlane.xlu0 %900
      %902 = vadd.xlane.f32.xlu0 %v885
      %v903 = vpop.xlane.xlu0 %902
      %904 = vadd.xlane.f32.xlu0 %v886
      %v905 = vpop.xlane.xlu0 %904
      %906 = vadd.xlane.f32.xlu0 %v887
      %v907 = vpop.xlane.xlu0 %906
      %908 = vadd.xlane.f32.xlu0 %v888
      %v909 = vpop.xlane.xlu0 %908
      %910 = vadd.xlane.f32.xlu0 %v889
      %v911 = vpop.xlane.xlu0 %910
      %912 = vadd.xlane.f32.xlu0 %v890
      %v913 = vpop.xlane.xlu0 %912
      %914 = vadd.xlane.f32.xlu0 %v891
      %v915 = vpop.xlane.xlu0 %914
      %916 = vadd.xlane.f32.xlu0 %v892
      %v917 = vpop.xlane.xlu0 %916
      %918 = vadd.xlane.f32.xlu0 %v893
      %v919 = vpop.xlane.xlu0 %918
      %920 = vadd.xlane.f32.xlu0 %v894
      %v921 = vpop.xlane.xlu0 %920
      %922 = vadd.xlane.f32.xlu0 %v895
      %v923 = vpop.xlane.xlu0 %922
      %924 = vadd.xlane.f32.xlu0 %v896
      %v925 = vpop.xlane.xlu0 %924
      %926 = vadd.xlane.f32.xlu0 %v897
      %v927 = vpop.xlane.xlu0 %926
      %928 = vadd.xlane.f32.xlu0 %v898
      %v929 = vpop.xlane.xlu0 %928
      %930 = vadd.xlane.f32.xlu0 %v899
      %v931 = vpop.xlane.xlu0 %930
      %v932 = vmul.f32 %v901, %v851
      %v933 = vmul.f32 %v903, %v851
      %v934 = vmul.f32 %v905, %v851
      %v935 = vmul.f32 %v907, %v851
      %v936 = vmul.f32 %v909, %v851
      %v937 = vmul.f32 %v911, %v851
      %v938 = vmul.f32 %v913, %v851
      %v939 = vmul.f32 %v915, %v851
      %v940 = vmul.f32 %v917, %v851
      %v941 = vmul.f32 %v919, %v851
      %v942 = vmul.f32 %v921, %v851
      %v943 = vmul.f32 %v923, %v851
      %v944 = vmul.f32 %v925, %v851
      %v945 = vmul.f32 %v927, %v851
      %v946 = vmul.f32 %v929, %v851
      %v947 = vmul.f32 %v931, %v851
      %v948 = vadd.f32 %v932, 1e-05
      %v949 = vadd.f32 %v933, 1e-05
      %v950 = vadd.f32 %v934, 1e-05
      %v951 = vadd.f32 %v935, 1e-05
      %v952 = vadd.f32 %v936, 1e-05
      %v953 = vadd.f32 %v937, 1e-05
      %v954 = vadd.f32 %v938, 1e-05
      %v955 = vadd.f32 %v939, 1e-05
      %v956 = vadd.f32 %v940, 1e-05
      %v957 = vadd.f32 %v941, 1e-05
      %v958 = vadd.f32 %v942, 1e-05
      %v959 = vadd.f32 %v943, 1e-05
      %v960 = vadd.f32 %v944, 1e-05
      %v961 = vadd.f32 %v945, 1e-05
      %v962 = vadd.f32 %v946, 1e-05
      %v963 = vadd.f32 %v947, 1e-05
      %v964 = vrsqrt.pop %v948
      %v965 = vmul.f32 %v964, %v948
      %v966 = vmul.f32 %v965, %v964
      %v967 = vmul.f32 0.5, %v966
      %v968 = vsub.f32 1.5, %v967
      %v969 = vmul.f32 %v964, %v968
      %vm970 = vweird.f32 %v948
      %vm971 = vweird.f32 %v964
      %vm972 = vmor %vm970, %vm971
      %v973 = vsel %vm972, %v964, %v969
      %v974 = vrsqrt.pop %v949
      %v975 = vmul.f32 %v974, %v949
      %v976 = vmul.f32 %v975, %v974
      %v977 = vmul.f32 0.5, %v976
      %v978 = vsub.f32 1.5, %v977
      %v979 = vmul.f32 %v974, %v978
      %vm980 = vweird.f32 %v949
      %vm981 = vweird.f32 %v974
      %vm982 = vmor %vm980, %vm981
      %v983 = vsel %vm982, %v974, %v979
      %v984 = vrsqrt.pop %v950
      %v985 = vmul.f32 %v984, %v950
      %v986 = vmul.f32 %v985, %v984
      %v987 = vmul.f32 0.5, %v986
      %v988 = vsub.f32 1.5, %v987
      %v989 = vmul.f32 %v984, %v988
      %vm990 = vweird.f32 %v950
      %vm991 = vweird.f32 %v984
      %vm992 = vmor %vm990, %vm991
      %v993 = vsel %vm992, %v984, %v989
      %v994 = vrsqrt.pop %v951
      %v995 = vmul.f32 %v994, %v951
      %v996 = vmul.f32 %v995, %v994
      %v997 = vmul.f32 0.5, %v996
      %v998 = vsub.f32 1.5, %v997
      %v999 = vmul.f32 %v994, %v998
      %vm1000 = vweird.f32 %v951
      %vm1001 = vweird.f32 %v994
      %vm1002 = vmor %vm1000, %vm1001
      %v1003 = vsel %vm1002, %v994, %v999
      %v1004 = vrsqrt.pop %v952
      %v1005 = vmul.f32 %v1004, %v952
      %v1006 = vmul.f32 %v1005, %v1004
      %v1007 = vmul.f32 0.5, %v1006
      %v1008 = vsub.f32 1.5, %v1007
      %v1009 = vmul.f32 %v1004, %v1008
      %vm1010 = vweird.f32 %v952
      %vm1011 = vweird.f32 %v1004
      %vm1012 = vmor %vm1010, %vm1011
      %v1013 = vsel %vm1012, %v1004, %v1009
      %v1014 = vrsqrt.pop %v953
      %v1015 = vmul.f32 %v1014, %v953
      %v1016 = vmul.f32 %v1015, %v1014
      %v1017 = vmul.f32 0.5, %v1016
      %v1018 = vsub.f32 1.5, %v1017
      %v1019 = vmul.f32 %v1014, %v1018
      %vm1020 = vweird.f32 %v953
      %vm1021 = vweird.f32 %v1014
      %vm1022 = vmor %vm1020, %vm1021
      %v1023 = vsel %vm1022, %v1014, %v1019
      %v1024 = vrsqrt.pop %v954
      %v1025 = vmul.f32 %v1024, %v954
      %v1026 = vmul.f32 %v1025, %v1024
      %v1027 = vmul.f32 0.5, %v1026
      %v1028 = vsub.f32 1.5, %v1027
      %v1029 = vmul.f32 %v1024, %v1028
      %vm1030 = vweird.f32 %v954
      %vm1031 = vweird.f32 %v1024
      %vm1032 = vmor %vm1030, %vm1031
      %v1033 = vsel %vm1032, %v1024, %v1029
      %v1034 = vrsqrt.pop %v955
      %v1035 = vmul.f32 %v1034, %v955
      %v1036 = vmul.f32 %v1035, %v1034
      %v1037 = vmul.f32 0.5, %v1036
      %v1038 = vsub.f32 1.5, %v1037
      %v1039 = vmul.f32 %v1034, %v1038
      %vm1040 = vweird.f32 %v955
      %vm1041 = vweird.f32 %v1034
      %vm1042 = vmor %vm1040, %vm1041
      %v1043 = vsel %vm1042, %v1034, %v1039
      %v1044 = vrsqrt.pop %v956
      %v1045 = vmul.f32 %v1044, %v956
      %v1046 = vmul.f32 %v1045, %v1044
      %v1047 = vmul.f32 0.5, %v1046
      %v1048 = vsub.f32 1.5, %v1047
      %v1049 = vmul.f32 %v1044, %v1048
      %vm1050 = vweird.f32 %v956
      %vm1051 = vweird.f32 %v1044
      %vm1052 = vmor %vm1050, %vm1051
      %v1053 = vsel %vm1052, %v1044, %v1049
      %v1054 = vrsqrt.pop %v957
      %v1055 = vmul.f32 %v1054, %v957
      %v1056 = vmul.f32 %v1055, %v1054
      %v1057 = vmul.f32 0.5, %v1056
      %v1058 = vsub.f32 1.5, %v1057
      %v1059 = vmul.f32 %v1054, %v1058
      %vm1060 = vweird.f32 %v957
      %vm1061 = vweird.f32 %v1054
      %vm1062 = vmor %vm1060, %vm1061
      %v1063 = vsel %vm1062, %v1054, %v1059
      %v1064 = vrsqrt.pop %v958
      %v1065 = vmul.f32 %v1064, %v958
      %v1066 = vmul.f32 %v1065, %v1064
      %v1067 = vmul.f32 0.5, %v1066
      %v1068 = vsub.f32 1.5, %v1067
      %v1069 = vmul.f32 %v1064, %v1068
      %vm1070 = vweird.f32 %v958
      %vm1071 = vweird.f32 %v1064
      %vm1072 = vmor %vm1070, %vm1071
      %v1073 = vsel %vm1072, %v1064, %v1069
      %v1074 = vrsqrt.pop %v959
      %v1075 = vmul.f32 %v1074, %v959
      %v1076 = vmul.f32 %v1075, %v1074
      %v1077 = vmul.f32 0.5, %v1076
      %v1078 = vsub.f32 1.5, %v1077
      %v1079 = vmul.f32 %v1074, %v1078
      %vm1080 = vweird.f32 %v959
      %vm1081 = vweird.f32 %v1074
      %vm1082 = vmor %vm1080, %vm1081
      %v1083 = vsel %vm1082, %v1074, %v1079
      %v1084 = vrsqrt.pop %v960
      %v1085 = vmul.f32 %v1084, %v960
      %v1086 = vmul.f32 %v1085, %v1084
      %v1087 = vmul.f32 0.5, %v1086
      %v1088 = vsub.f32 1.5, %v1087
      %v1089 = vmul.f32 %v1084, %v1088
      %vm1090 = vweird.f32 %v960
      %vm1091 = vweird.f32 %v1084
      %vm1092 = vmor %vm1090, %vm1091
      %v1093 = vsel %vm1092, %v1084, %v1089
      %v1094 = vrsqrt.pop %v961
      %v1095 = vmul.f32 %v1094, %v961
      %v1096 = vmul.f32 %v1095, %v1094
      %v1097 = vmul.f32 0.5, %v1096
      %v1098 = vsub.f32 1.5, %v1097
      %v1099 = vmul.f32 %v1094, %v1098
      %vm1100 = vweird.f32 %v961
      %vm1101 = vweird.f32 %v1094
      %vm1102 = vmor %vm1100, %vm1101
      %v1103 = vsel %vm1102, %v1094, %v1099
      %v1104 = vrsqrt.pop %v962
      %v1105 = vmul.f32 %v1104, %v962
      %v1106 = vmul.f32 %v1105, %v1104
      %v1107 = vmul.f32 0.5, %v1106
      %v1108 = vsub.f32 1.5, %v1107
      %v1109 = vmul.f32 %v1104, %v1108
      %vm1110 = vweird.f32 %v962
      %vm1111 = vweird.f32 %v1104
      %vm1112 = vmor %vm1110, %vm1111
      %v1113 = vsel %vm1112, %v1104, %v1109
      %v1114 = vrsqrt.pop %v963
      %v1115 = vmul.f32 %v1114, %v963
      %v1116 = vmul.f32 %v1115, %v1114
      %v1117 = vmul.f32 0.5, %v1116
      %v1118 = vsub.f32 1.5, %v1117
      %v1119 = vmul.f32 %v1114, %v1118
      %vm1120 = vweird.f32 %v963
      %vm1121 = vweird.f32 %v1114
      %vm1122 = vmor %vm1120, %vm1121
      %v1123 = vsel %vm1122, %v1114, %v1119
      %v1124 = vmul.f32 %v868, %v973
      %v1125 = vmul.f32 %v869, %v983
      %v1126 = vmul.f32 %v870, %v993
      %v1127 = vmul.f32 %v871, %v1003
      %v1128 = vmul.f32 %v872, %v1013
      %v1129 = vmul.f32 %v873, %v1023
      %v1130 = vmul.f32 %v874, %v1033
      %v1131 = vmul.f32 %v875, %v1043
      %v1132 = vmul.f32 %v876, %v1053
      %v1133 = vmul.f32 %v877, %v1063
      %v1134 = vmul.f32 %v878, %v1073
      %v1135 = vmul.f32 %v879, %v1083
      %v1136 = vmul.f32 %v880, %v1093
      %v1137 = vmul.f32 %v881, %v1103
      %v1138 = vmul.f32 %v882, %v1113
      %v1139 = vmul.f32 %v883, %v1123
      %v1140 = vld [vmem:[%s5] sm:$0x1]
      %v1142 = vperm.slane %v1140, 0
      %v1144 = vmul.f32 %v1124, %v1142
      %v1145 = vmul.f32 %v1125, %v1142
      %v1146 = vmul.f32 %v1126, %v1142
      %v1147 = vmul.f32 %v1127, %v1142
      %v1148 = vmul.f32 %v1128, %v1142
      %v1149 = vmul.f32 %v1129, %v1142
      %v1150 = vmul.f32 %v1130, %v1142
      %v1151 = vmul.f32 %v1131, %v1142
      %v1152 = vmul.f32 %v1132, %v1142
      %v1153 = vmul.f32 %v1133, %v1142
      %v1154 = vmul.f32 %v1134, %v1142
      %v1155 = vmul.f32 %v1135, %v1142
      %v1156 = vmul.f32 %v1136, %v1142
      %v1157 = vmul.f32 %v1137, %v1142
      %v1158 = vmul.f32 %v1138, %v1142
      %v1159 = vmul.f32 %v1139, %v1142
      %v1160 = vld [vmem:[%s6] sm:$0x1]
      %v1162 = vperm.slane %v1160, 0
      %v1164 = vadd.f32 %v1144, %v1162
      %v1165 = vadd.f32 %v1145, %v1162
      %v1166 = vadd.f32 %v1146, %v1162
      %v1167 = vadd.f32 %v1147, %v1162
      %v1168 = vadd.f32 %v1148, %v1162
      %v1169 = vadd.f32 %v1149, %v1162
      %v1170 = vadd.f32 %v1150, %v1162
      %v1171 = vadd.f32 %v1151, %v1162
      %v1172 = vadd.f32 %v1152, %v1162
      %v1173 = vadd.f32 %v1153, %v1162
      %v1174 = vadd.f32 %v1154, %v1162
      %v1175 = vadd.f32 %v1155, %v1162
      %v1176 = vadd.f32 %v1156, %v1162
      %v1177 = vadd.f32 %v1157, %v1162
      %v1178 = vadd.f32 %v1158, %v1162
      %v1179 = vadd.f32 %v1159, %v1162
      %1180 = vst [vmem:[#allocation11] sm:$0xff] %v1164
      %1181 = vst [vmem:[#allocation11 + $0x8] sm:$0xff] %v1165
      %1182 = vst [vmem:[#allocation11 + $0x10] sm:$0xff] %v1166
      %1183 = vst [vmem:[#allocation11 + $0x18] sm:$0xff] %v1167
      %1184 = vst [vmem:[#allocation11 + $0x20] sm:$0xff] %v1168
      %1185 = vst [vmem:[#allocation11 + $0x28] sm:$0xff] %v1169
      %1186 = vst [vmem:[#allocation11 + $0x30] sm:$0xff] %v1170
      %1187 = vst [vmem:[#allocation11 + $0x38] sm:$0xff] %v1171
      %1188 = vst [vmem:[#allocation11 + $0x40] sm:$0xff] %v1172
      %1189 = vst [vmem:[#allocation11 + $0x48] sm:$0xff] %v1173
      %1190 = vst [vmem:[#allocation11 + $0x50] sm:$0xff] %v1174
      %1191 = vst [vmem:[#allocation11 + $0x58] sm:$0xff] %v1175
      %1192 = vst [vmem:[#allocation11 + $0x60] sm:$0xff] %v1176
      %1193 = vst [vmem:[#allocation11 + $0x68] sm:$0xff] %v1177
      %1194 = vst [vmem:[#allocation11 + $0x70] sm:$0xff] %v1178
      %1195 = vst [vmem:[#allocation11 + $0x78] sm:$0xff] %v1179
    $region53: #{tpu_custom_call.1} parent=1 // pred_fallthru
      _
    // Predicated region
    $region54: #{tpu_custom_call.1} parent=1 // pred_check
      _
    $region55: #{tpu_custom_call.1} parent=1 // pred_check_branch
      %1197 = sbr.rel (0) target = $region57
    $region56: #{tpu_custom_call.1} parent=1 // pred_region
      %1199 = vsyncadd [#allocation5], 0
      %s1200 = sshll.u32 [#allocation11], 4
      %s1201 = int_to_ptr.vmem [resolvable:$true] %s1200
      %s1202 = sshll.u32 %s7, 4
      %s1203 = int_to_ptr.hbm [resolvable:$true] %s1202
      %1208 = dma.vmem_to_hbm [thread:$0]  %s1201, 2048, %s1203, [#allocation5], 128, 128, 8
    $region57: #{tpu_custom_call.1} parent=1 // pred_fallthru
      _
    // Predicated region
    $region58: #{tpu_custom_call.1} parent=1 // pred_check
      _
    $region59: #{tpu_custom_call.1} parent=1 // pred_check_branch
      %1210 = sbr.rel (0) target = $region61
    $region60: #{tpu_custom_call.1} parent=1 // pred_region
      %1212 = dma.done [#allocation5], 2048
    $region61: #{tpu_custom_call.1} parent=1 // pred_fallthru
      _
    %1213 = vsyncpa [#allocation4], 1
    %1214 = vsyncpa [#allocation7], 1
    %1215 = vsyncpa [#allocation10], 1
    %1216 = vsyncpa [#allocation5], 1

</llo_original>
